<compile_context>
chip_gen: v7x
topology: tpu7x:2x2x1
jax: 0.10.0
libtpu: 0.0.40
codegen_flags: <defaults>
</compile_context>

<pallas_src>
import jax
import jax.numpy as jnp
from jax.experimental import pallas as pl
from jax.experimental.pallas import tpu as pltpu

ALPHABETS_COUNT = 30
H1, H2, H3, OUT = 32, 64, 32, 8
OUT_PAD = 128                     # lane-dense output width (>= OUT, multiple of 128)


def _round_up(n, m):
    return ((n + m - 1) // m) * m


# ----------------------------------------------------------------------------
# Fused MLP kernel: one batch tile per grid step, all layers in vregs/VMEM.
# x_ref is bf16; weights are bf16; biases f32; accumulation f32 on the MXU.
# ----------------------------------------------------------------------------
def alphabet_kernel(x_ref, w1_ref, b1_ref, w2_ref, b2_ref,
                    w3_ref, b3_ref, w4_ref, b4_ref, out_ref):
    f32, bf16 = jnp.float32, jnp.bfloat16

    def layer(a, w_ref, b_ref, relu):
        y = jnp.dot(a, w_ref[...], preferred_element_type=f32) + b_ref[...]
        if relu:
            # ReLU in f32, then feed the next MXU stage bf16.
            return jnp.maximum(y, 0.0).astype(bf16)
        return y

    h = layer(x_ref[...], w1_ref, b1_ref, relu=True)    # (bt, 32)  bf16
    h = layer(h, w2_ref, b2_ref, relu=True)             # (bt, 64)  bf16
    h = layer(h, w3_ref, b3_ref, relu=True)             # (bt, 32)  bf16
    out_ref[...] = layer(h, w4_ref, b4_ref, relu=False)  # (bt, 128) f32


# ----------------------------------------------------------------------------
# One-time parameter prep (hoisted off the forward path).
#  - PyTorch Linear stores (out, in); kernel wants (in, out)  -> transpose.
#  - Weights cast to bf16 (MXU inputs), biases stay f32 (accumulator adds).
#  - Final layer padded to 128 output lanes with zeros (lane-dense stores).
# ----------------------------------------------------------------------------
def prepare_params(p):
    bf16, f32 = jnp.bfloat16, jnp.float32
    w4p = jnp.zeros((H3, OUT_PAD), f32).at[:, :OUT].set(p['w4'].T.astype(f32))
    b4p = jnp.zeros((1, OUT_PAD), f32).at[:, :OUT].set(p['b4'].astype(f32))
    return (
        p['w1'].T.astype(bf16), p['b1'].reshape(1, -1).astype(f32),
        p['w2'].T.astype(bf16), p['b2'].reshape(1, -1).astype(f32),
        p['w3'].T.astype(bf16), p['b3'].reshape(1, -1).astype(f32),
        w4p.astype(bf16), b4p,
    )


# ----------------------------------------------------------------------------
# Per-generation tile size / VMEM budget.
#   v5e: default scoped VMEM is only 16 MiB -> raise it; moderate tile.
#   v6e: 128 MiB physical -> biggest tile, higher limit.
#   v7x: only 64 MiB physical -> keep the limit <= 48 MiB.
# ----------------------------------------------------------------------------
def _per_generation_defaults():
    try:
        kind = jax.devices()[0].device_kind.lower()
    except Exception:
        kind = ""
    if "v5" in kind:
        return 4096, 40 * 1024 * 1024
    if "v6" in kind:
        return 8192, 64 * 1024 * 1024
    if "v7" in kind:
        return 4096, 48 * 1024 * 1024
    return 4096, 48 * 1024 * 1024


def _pick_tiling(batch, block_rows):
    """Split the 8-aligned batch evenly over the fewest tiles <= block_rows."""
    b8 = _round_up(max(batch, 1), 8)
    ntiles = -(-b8 // block_rows)                  # ceil
    bt = _round_up(-(-b8 // ntiles), 8)            # even split, 8-aligned rows
    bp = bt * ntiles                               # waste <= 8 rows per tile
    return bt, bp, ntiles


# ----------------------------------------------------------------------------
# Wrapper: pad batch, run the batch-gridded fused kernel, slice result back.
# ----------------------------------------------------------------------------
def alphabet_forward(x, prepared, block_rows=None, vmem_limit_bytes=None):
    B = x.shape[0]
    gen_rows, gen_vmem = _per_generation_defaults()
    block_rows = block_rows or gen_rows
    vmem_limit_bytes = vmem_limit_bytes or gen_vmem

    bt, bp, ntiles = _pick_tiling(B, block_rows)

    x = x.astype(jnp.bfloat16)                     # bf16 MXU input, cast once
    if bp != B:
        x = jnp.pad(x, ((0, bp - B), (0, 0)))

    w1, b1, w2, b2, w3, b3, w4, b4 = prepared

    def rep(arr):
        # whole-array block, constant index_map -> VMEM-resident across grid
        return pl.BlockSpec(arr.shape, lambda i: (0, 0))

    flops = 2 * bp * (ALPHABETS_COUNT * H1 + H1 * H2 + H2 * H3 + H3 * OUT_PAD)
    weight_bytes = sum(int(a.size) * a.dtype.itemsize for a in prepared)
    cost = pl.CostEstimate(
        flops=int(flops),
        transcendentals=0,
        bytes_accessed=int(bp * (ALPHABETS_COUNT * 2 + OUT_PAD * 4) + weight_bytes),
    )

    out = pl.pallas_call(
        alphabet_kernel,
        out_shape=jax.ShapeDtypeStruct((bp, OUT_PAD), jnp.float32),
        grid_spec=pltpu.PrefetchScalarGridSpec(
            num_scalar_prefetch=0,
            grid=(ntiles,),
            in_specs=[
                pl.BlockSpec((bt, ALPHABETS_COUNT), lambda i: (i, 0)),
                rep(w1), rep(b1),
                rep(w2), rep(b2),
                rep(w3), rep(b3),
                rep(w4), rep(b4),
            ],
            out_specs=pl.BlockSpec((bt, OUT_PAD), lambda i: (i, 0)),
        ),
        compiler_params=pltpu.CompilerParams(
            dimension_semantics=("parallel",),
            vmem_limit_bytes=int(vmem_limit_bytes)),
        cost_estimate=cost,
    )(x, w1, b1, w2, b2, w3, b3, w4, b4)

    return out[:B, :OUT]


# ----------------------------------------------------------------------------
# Deterministic parameter init (PyTorch Linear default: U(-1/sqrt(fan_in), .))
# ----------------------------------------------------------------------------
def init_params(key):
    def uni(k, shape, fan_in):
        bound = float(fan_in) ** -0.5
        return jax.random.uniform(k, shape, jnp.float32, -bound, bound)

    ks = jax.random.split(key, 8)
    return {
        'w1': uni(ks[0], (H1, ALPHABETS_COUNT), ALPHABETS_COUNT),
        'b1': uni(ks[1], (H1,), ALPHABETS_COUNT),
        'w2': uni(ks[2], (H2, H1), H1),
        'b2': uni(ks[3], (H2,), H1),
        'w3': uni(ks[4], (H3, H2), H2),
        'b3': uni(ks[5], (H3,), H2),
        'w4': uni(ks[6], (OUT, H3), H3),
        'b4': uni(ks[7], (OUT,), H3),
    }


# ----------------------------------------------------------------------------
# Pure-JAX reference (mirrors the PyTorch f32 forward) for correctness check.
# ----------------------------------------------------------------------------
def reference_forward(x, p):
    hi = jax.lax.Precision.HIGHEST

    def lin(v, w, b):
        return jnp.dot(v, w.T, precision=hi) + b

    h = jnp.maximum(lin(x, p['w1'], p['b1']), 0.0)
    h = jnp.maximum(lin(h, p['w2'], p['b2']), 0.0)
    h = jnp.maximum(lin(h, p['w3'], p['b3']), 0.0)
    return lin(h, p['w4'], p['b4'])


if __name__ == "__main__":
    key = jax.random.PRNGKey(0)
    kp, kx = jax.random.split(key)
    params = init_params(kp)
    prepared = prepare_params(params)   # one-time weight reformatting / casting

    B = 2
    x = jax.random.normal(kx, (B, ALPHABETS_COUNT), jnp.float32)

    out = jax.block_until_ready(alphabet_forward(x, prepared))
    ref = jax.block_until_ready(reference_forward(x, params))

    assert out.shape == (B, OUT) and out.dtype == jnp.float32
    # bf16 MXU inputs with f32 accumulation -> loosened tolerance vs f32 ref.
    if not jnp.allclose(out, ref, atol=2e-2, rtol=2e-2):
        raise AssertionError(
            f"mismatch vs reference, max abs err = {float(jnp.max(jnp.abs(out - ref)))}")
    print("KERNEL_OK")
</pallas_src>

<mosaic_0001>
module attributes {stable_mosaic.version = 11 : i64} {
  func.func @alphabet_kernel(%arg0: i32, %arg1: memref<8x30xbf16, #tpu.memory_space<vmem>>, %arg2: memref<30x32xbf16, #tpu.memory_space<vmem>>, %arg3: memref<1x32xf32, #tpu.memory_space<vmem>>, %arg4: memref<32x64xbf16, #tpu.memory_space<vmem>>, %arg5: memref<1x64xf32, #tpu.memory_space<vmem>>, %arg6: memref<64x32xbf16, #tpu.memory_space<vmem>>, %arg7: memref<1x32xf32, #tpu.memory_space<vmem>>, %arg8: memref<32x128xbf16, #tpu.memory_space<vmem>>, %arg9: memref<1x128xf32, #tpu.memory_space<vmem>>, %arg10: memref<8x128xf32, #tpu.memory_space<vmem>>) attributes {dimension_semantics = [#tpu.dimension_semantics<parallel>], iteration_bounds = array<i64: 1>, scalar_prefetch = 0 : i64, scratch_operands = 0 : i64, tpu.core_type = #tpu.core_type<tc>, window_params = [{transform_indices = @transform_0, window_bounds = array<i64: 8, 30>}, {pipeline_mode = #tpu.pipeline_mode<synchronous>, transform_indices = @transform_1, window_bounds = array<i64: 30, 32>}, {pipeline_mode = #tpu.pipeline_mode<synchronous>, transform_indices = @transform_2, window_bounds = array<i64: 1, 32>}, {pipeline_mode = #tpu.pipeline_mode<synchronous>, transform_indices = @transform_3, window_bounds = array<i64: 32, 64>}, {pipeline_mode = #tpu.pipeline_mode<synchronous>, transform_indices = @transform_4, window_bounds = array<i64: 1, 64>}, {pipeline_mode = #tpu.pipeline_mode<synchronous>, transform_indices = @transform_5, window_bounds = array<i64: 64, 32>}, {pipeline_mode = #tpu.pipeline_mode<synchronous>, transform_indices = @transform_6, window_bounds = array<i64: 1, 32>}, {pipeline_mode = #tpu.pipeline_mode<synchronous>, transform_indices = @transform_7, window_bounds = array<i64: 32, 128>}, {pipeline_mode = #tpu.pipeline_mode<synchronous>, transform_indices = @transform_8, window_bounds = array<i64: 1, 128>}, {transform_indices = @transform_9, window_bounds = array<i64: 8, 128>}]} {
    %c0 = arith.constant 0 : index
    %c0_0 = arith.constant 0 : index
    %0 = vector.load %arg1[%c0, %c0_0] : memref<8x30xbf16, #tpu.memory_space<vmem>>, vector<8x30xbf16>
    %c0_1 = arith.constant 0 : index
    %c0_2 = arith.constant 0 : index
    %1 = vector.load %arg2[%c0_1, %c0_2] : memref<30x32xbf16, #tpu.memory_space<vmem>>, vector<30x32xbf16>
    %cst = arith.constant dense<0.000000e+00> : vector<8x32xf32>
    %2 = tpu.matmul %0, %1, %cst {dimension_numbers = #tpu.dot_dimension_numbers<[1], [0], [0], [1], [0, 0, 1, 1], [], []>} : vector<8x30xbf16>, vector<30x32xbf16>, vector<8x32xf32> -> vector<8x32xf32>
    %c0_3 = arith.constant 0 : index
    %c0_4 = arith.constant 0 : index
    %3 = vector.load %arg3[%c0_3, %c0_4] : memref<1x32xf32, #tpu.memory_space<vmem>>, vector<1x32xf32>
    %4 = vector.broadcast %3 : vector<1x32xf32> to vector<8x32xf32>
    %5 = arith.addf %2, %4 : vector<8x32xf32>
    %cst_5 = arith.constant 0.000000e+00 : f32
    %6 = vector.broadcast %cst_5 : f32 to vector<8x32xf32>
    %7 = arith.maximumf %5, %6 : vector<8x32xf32>
    %8 = arith.truncf %7 : vector<8x32xf32> to vector<8x32xbf16>
    %c0_6 = arith.constant 0 : index
    %c0_7 = arith.constant 0 : index
    %9 = vector.load %arg4[%c0_6, %c0_7] : memref<32x64xbf16, #tpu.memory_space<vmem>>, vector<32x64xbf16>
    %cst_8 = arith.constant dense<0.000000e+00> : vector<8x64xf32>
    %10 = tpu.matmul %8, %9, %cst_8 {dimension_numbers = #tpu.dot_dimension_numbers<[1], [0], [0], [1], [0, 0, 1, 1], [], []>} : vector<8x32xbf16>, vector<32x64xbf16>, vector<8x64xf32> -> vector<8x64xf32>
    %c0_9 = arith.constant 0 : index
    %c0_10 = arith.constant 0 : index
    %11 = vector.load %arg5[%c0_9, %c0_10] : memref<1x64xf32, #tpu.memory_space<vmem>>, vector<1x64xf32>
    %12 = vector.broadcast %11 : vector<1x64xf32> to vector<8x64xf32>
    %13 = arith.addf %10, %12 : vector<8x64xf32>
    %cst_11 = arith.constant 0.000000e+00 : f32
    %14 = vector.broadcast %cst_11 : f32 to vector<8x64xf32>
    %15 = arith.maximumf %13, %14 : vector<8x64xf32>
    %16 = arith.truncf %15 : vector<8x64xf32> to vector<8x64xbf16>
    %c0_12 = arith.constant 0 : index
    %c0_13 = arith.constant 0 : index
    %17 = vector.load %arg6[%c0_12, %c0_13] : memref<64x32xbf16, #tpu.memory_space<vmem>>, vector<64x32xbf16>
    %cst_14 = arith.constant dense<0.000000e+00> : vector<8x32xf32>
    %18 = tpu.matmul %16, %17, %cst_14 {dimension_numbers = #tpu.dot_dimension_numbers<[1], [0], [0], [1], [0, 0, 1, 1], [], []>} : vector<8x64xbf16>, vector<64x32xbf16>, vector<8x32xf32> -> vector<8x32xf32>
    %c0_15 = arith.constant 0 : index
    %c0_16 = arith.constant 0 : index
    %19 = vector.load %arg7[%c0_15, %c0_16] : memref<1x32xf32, #tpu.memory_space<vmem>>, vector<1x32xf32>
    %20 = vector.broadcast %19 : vector<1x32xf32> to vector<8x32xf32>
    %21 = arith.addf %18, %20 : vector<8x32xf32>
    %cst_17 = arith.constant 0.000000e+00 : f32
    %22 = vector.broadcast %cst_17 : f32 to vector<8x32xf32>
    %23 = arith.maximumf %21, %22 : vector<8x32xf32>
    %24 = arith.truncf %23 : vector<8x32xf32> to vector<8x32xbf16>
    %c0_18 = arith.constant 0 : index
    %c0_19 = arith.constant 0 : index
    %25 = vector.load %arg8[%c0_18, %c0_19] : memref<32x128xbf16, #tpu.memory_space<vmem>>, vector<32x128xbf16>
    %cst_20 = arith.constant dense<0.000000e+00> : vector<8x128xf32>
    %26 = tpu.matmul %24, %25, %cst_20 {dimension_numbers = #tpu.dot_dimension_numbers<[1], [0], [0], [1], [0, 0, 1, 1], [], []>} : vector<8x32xbf16>, vector<32x128xbf16>, vector<8x128xf32> -> vector<8x128xf32>
    %c0_21 = arith.constant 0 : index
    %c0_22 = arith.constant 0 : index
    %27 = vector.load %arg9[%c0_21, %c0_22] : memref<1x128xf32, #tpu.memory_space<vmem>>, vector<1x128xf32>
    %28 = vector.broadcast %27 : vector<1x128xf32> to vector<8x128xf32>
    %29 = arith.addf %26, %28 : vector<8x128xf32>
    %c0_23 = arith.constant 0 : index
    %c0_24 = arith.constant 0 : index
    %30 = vector.load %arg10[%c0_23, %c0_24] : memref<8x128xf32, #tpu.memory_space<vmem>>, vector<8x128xf32>
    tpu.vector_store %arg10[%c0_23, %c0_24], %29 {strides = array<i32>} : memref<8x128xf32, #tpu.memory_space<vmem>>, vector<8x128xf32>,
    return
  }
  func.func @transform_0(%arg0: i32) -> (i32, i32) {
    %c0_i32 = arith.constant 0 : i32
    %c0_i32_0 = arith.constant 0 : i32
    return %arg0, %c0_i32 : i32, i32
  }
  func.func @transform_1(%arg0: i32) -> (i32, i32) {
    %c0_i32 = arith.constant 0 : i32
    %c0_i32_0 = arith.constant 0 : i32
    %c0_i32_1 = arith.constant 0 : i32
    return %c0_i32, %c0_i32_0 : i32, i32
  }
  func.func @transform_2(%arg0: i32) -> (i32, i32) {
    %c0_i32 = arith.constant 0 : i32
    %c0_i32_0 = arith.constant 0 : i32
    %c0_i32_1 = arith.constant 0 : i32
    return %c0_i32, %c0_i32_0 : i32, i32
  }
  func.func @transform_3(%arg0: i32) -> (i32, i32) {
    %c0_i32 = arith.constant 0 : i32
    %c0_i32_0 = arith.constant 0 : i32
    %c0_i32_1 = arith.constant 0 : i32
    return %c0_i32, %c0_i32_0 : i32, i32
  }
  func.func @transform_4(%arg0: i32) -> (i32, i32) {
    %c0_i32 = arith.constant 0 : i32
    %c0_i32_0 = arith.constant 0 : i32
    %c0_i32_1 = arith.constant 0 : i32
    return %c0_i32, %c0_i32_0 : i32, i32
  }
  func.func @transform_5(%arg0: i32) -> (i32, i32) {
    %c0_i32 = arith.constant 0 : i32
    %c0_i32_0 = arith.constant 0 : i32
    %c0_i32_1 = arith.constant 0 : i32
    return %c0_i32, %c0_i32_0 : i32, i32
  }
  func.func @transform_6(%arg0: i32) -> (i32, i32) {
    %c0_i32 = arith.constant 0 : i32
    %c0_i32_0 = arith.constant 0 : i32
    %c0_i32_1 = arith.constant 0 : i32
    return %c0_i32, %c0_i32_0 : i32, i32
  }
  func.func @transform_7(%arg0: i32) -> (i32, i32) {
    %c0_i32 = arith.constant 0 : i32
    %c0_i32_0 = arith.constant 0 : i32
    %c0_i32_1 = arith.constant 0 : i32
    return %c0_i32, %c0_i32_0 : i32, i32
  }
  func.func @transform_8(%arg0: i32) -> (i32, i32) {
    %c0_i32 = arith.constant 0 : i32
    %c0_i32_0 = arith.constant 0 : i32
    %c0_i32_1 = arith.constant 0 : i32
    return %c0_i32, %c0_i32_0 : i32, i32
  }
  func.func @transform_9(%arg0: i32) -> (i32, i32) {
    %c0_i32 = arith.constant 0 : i32
    %c0_i32_0 = arith.constant 0 : i32
    return %arg0, %c0_i32 : i32, i32
  }
}

</mosaic_0001>

<llo_original>
// kernel: tpu_custom_call.1
$region0: #{tpu_custom_call.1}
  #allocation0 [shape = 'u32[]', space=smem, size = 0x4, offset = 0x4, fixed_abs, tag = 'smem constant byte address 0x4 - core index']
  #allocation1 [shape = 'u32[144,128]{1,0:T(1,128)}', space=vmem, size = 0x12000, scoped, tag = 'internal scratch']
  %s0 = inlined_call_operand.hbm [shape: bf16[8,30], index: 0, kind: input, shape index: {}]
  %s1 = inlined_call_operand.vmem [shape: bf16[30,32], index: 1, kind: input, shape index: {}]
  %s2 = inlined_call_operand.vmem [shape: f32[1,32], index: 2, kind: input, shape index: {}]
  %s3 = inlined_call_operand.vmem [shape: bf16[32,64], index: 3, kind: input, shape index: {}]
  %s4 = inlined_call_operand.vmem [shape: f32[1,64], index: 4, kind: input, shape index: {}]
  %s5 = inlined_call_operand.vmem [shape: bf16[64,32], index: 5, kind: input, shape index: {}]
  %s6 = inlined_call_operand.vmem [shape: f32[1,32], index: 6, kind: input, shape index: {}]
  %s7 = inlined_call_operand.vmem [shape: bf16[32,128], index: 7, kind: input, shape index: {}]
  %s8 = inlined_call_operand.vmem [shape: f32[1,128], index: 8, kind: input, shape index: {}]
  %s9 = inlined_call_operand.hbm [shape: f32[8,128], index: 9, kind: output, shape index: {}]
  %s10 = sld [smem:[#allocation0]]
  $region50: #{tpu_custom_call.1} parent=0
    _
  %s12 = ssub.s32 1, %s10
  %s13 = scalar_select 0, %s12, %s10
  $region1: #{tpu_custom_call.1} parent=0
    #allocation2 [shape = 'u8[2048]{0}', space=vmem, size = 0x800, scoped, tag = 'input window, operand 0, single buffered']
    #allocation3 [shape = 's32[1]{0}', space=sflag, size = 0x4, scoped, tag = 'scoped memory for tpu_custom_call.1']
    #allocation4 [shape = 's32[1]{0}', space=sflag, size = 0x4, scoped, tag = 'scoped memory for tpu_custom_call.1']
    #allocation5 [shape = 'u8[4096]{0}', space=vmem, size = 0x1000, scoped, tag = 'output window, operand 0, single buffered']
    %14 = vsyncpa [#allocation3], 0
    %15 = vsyncpa [#allocation4], 0
    // Predicated region
    $region2: #{tpu_custom_call.1} parent=1 // pred_check
      _
    $region3: #{tpu_custom_call.1} parent=1 // pred_check_branch
      %17 = sbr.rel (0) target = $region5
    $region4: #{tpu_custom_call.1} parent=1 // pred_region
      %s19 = ssub.s32 64, 64
      %20 = vsyncadd [#allocation3], %s19
      %s22 = sshll.u32 [#allocation2], 4
      %s23 = int_to_ptr.vmem [resolvable:$true] %s22
      %25 = dma.hbm_to_vmem [thread:$0]  %s0, 64, %s23, [#allocation3]
    $region5: #{tpu_custom_call.1} parent=1 // pred_fallthru
      _
    // Predicated region
    $region6: #{tpu_custom_call.1} parent=1 // pred_check
      _
    $region7: #{tpu_custom_call.1} parent=1 // pred_check_branch
      %27 = sbr.rel (0) target = $region9
    $region8: #{tpu_custom_call.1} parent=1 // pred_region
      _
    $region9: #{tpu_custom_call.1} parent=1 // pred_fallthru
      _
    // Predicated region
    $region10: #{tpu_custom_call.1} parent=1 // pred_check
      _
    $region11: #{tpu_custom_call.1} parent=1 // pred_check_branch
      %29 = sbr.rel (0) target = $region13
    $region12: #{tpu_custom_call.1} parent=1 // pred_region
      _
    $region13: #{tpu_custom_call.1} parent=1 // pred_fallthru
      _
    // Predicated region
    $region14: #{tpu_custom_call.1} parent=1 // pred_check
      _
    $region15: #{tpu_custom_call.1} parent=1 // pred_check_branch
      %31 = sbr.rel (0) target = $region17
    $region16: #{tpu_custom_call.1} parent=1 // pred_region
      _
    $region17: #{tpu_custom_call.1} parent=1 // pred_fallthru
      _
    // Predicated region
    $region18: #{tpu_custom_call.1} parent=1 // pred_check
      _
    $region19: #{tpu_custom_call.1} parent=1 // pred_check_branch
      %33 = sbr.rel (0) target = $region21
    $region20: #{tpu_custom_call.1} parent=1 // pred_region
      _
    $region21: #{tpu_custom_call.1} parent=1 // pred_fallthru
      _
    // Predicated region
    $region22: #{tpu_custom_call.1} parent=1 // pred_check
      _
    $region23: #{tpu_custom_call.1} parent=1 // pred_check_branch
      %35 = sbr.rel (0) target = $region25
    $region24: #{tpu_custom_call.1} parent=1 // pred_region
      _
    $region25: #{tpu_custom_call.1} parent=1 // pred_fallthru
      _
    // Predicated region
    $region26: #{tpu_custom_call.1} parent=1 // pred_check
      _
    $region27: #{tpu_custom_call.1} parent=1 // pred_check_branch
      %37 = sbr.rel (0) target = $region29
    $region28: #{tpu_custom_call.1} parent=1 // pred_region
      _
    $region29: #{tpu_custom_call.1} parent=1 // pred_fallthru
      _
    // Predicated region
    $region30: #{tpu_custom_call.1} parent=1 // pred_check
      _
    $region31: #{tpu_custom_call.1} parent=1 // pred_check_branch
      %39 = sbr.rel (0) target = $region33
    $region32: #{tpu_custom_call.1} parent=1 // pred_region
      _
    $region33: #{tpu_custom_call.1} parent=1 // pred_fallthru
      _
    // Predicated region
    $region34: #{tpu_custom_call.1} parent=1 // pred_check
      _
    $region35: #{tpu_custom_call.1} parent=1 // pred_check_branch
      %41 = sbr.rel (0) target = $region37
    $region36: #{tpu_custom_call.1} parent=1 // pred_region
      _
    $region37: #{tpu_custom_call.1} parent=1 // pred_fallthru
      _
    // Predicated region
    $region38: #{tpu_custom_call.1} parent=1 // pred_check
      _
    $region39: #{tpu_custom_call.1} parent=1 // pred_check_branch
      %43 = sbr.rel (0) target = $region41
    $region40: #{tpu_custom_call.1} parent=1 // pred_region
      %44 = dma.done [#allocation3], 64
    $region41: #{tpu_custom_call.1} parent=1 // pred_fallthru
      _
    %v46 = vld [vmem:[#allocation2] sm:$0xf]
    %v47 = vld [vmem:[%s1] sm:$0xf]
    %v48 = vld [vmem:[%s1 + $0x4] sm:$0xf]
    %v49 = vld [vmem:[%s1 + $0x8] sm:$0xf]
    %v50 = vld [vmem:[%s1 + $0xc] sm:$0x7]
    %v51 = vld [vmem:[%s2] sm:$0x1]
    %v53 = vlaneseq
    %v54 = vshrl.u32 %v53, 7
    %v55 = vsub.s32 0, %v54
    %v56 = vrot.slane %v51, %v55
    %v62 = vunpack.c.l.b16 %v47
    %v63 = vunpack.c.l.b16 %v48
    %v64 = vunpack.c.l.b16 %v49
    %v65 = vunpack.c.l.b16 %v50
    %v66 = vpack.c.b16 %v63, %v62
    %v67 = vpack.c.b16 %v65, %v64
    %vm69 = vcmask 244736
    %v71 = vsel %vm69, %v46, 0
    %vm73 = vcmask 1046528
    %v75 = vsel %vm73, %v67, 0
    %77 = vmatprep.subr.bf16.mxu0 0
    %78 = vmatpush1.bf16.msra.mxu0 %v66
    %79 = vmatprep.subr.bf16.mxu0 0
    %80 = vmatpush1.bf16.msra.mxu0 %v75
    %81 = vmatprep.subr.bf16.mxu0 0
    %82 = vmatpush1.bf16.msra.mxu0 0
    %83 = vmatprep.subr.bf16.mxu0 0
    %84 = vmatpush1.bf16.msra.mxu0 0
    %85 = vmatprep.subr.bf16.mxu0 0
    %86 = vmatpush1.bf16.msra.mxu0 0
    %87 = vmatprep.subr.bf16.mxu0 0
    %88 = vmatpush1.bf16.msra.mxu0 0
    %89 = vmatprep.subr.bf16.mxu0 0
    %90 = vmatpush1.bf16.msra.mxu0 0
    %91 = vmatprep.subr.bf16.mxu0 0
    %92 = vmatpush1.bf16.msra.mxu0 0
    %93 = vmatprep.subr.bf16.mxu0 0
    %94 = vmatpush1.bf16.msra.mxu0 0
    %95 = vmatprep.subr.bf16.mxu0 0
    %96 = vmatpush1.bf16.msra.mxu0 0
    %97 = vmatprep.subr.bf16.mxu0 0
    %98 = vmatpush1.bf16.msra.mxu0 0
    %99 = vmatprep.subr.bf16.mxu0 0
    %100 = vmatpush1.bf16.msra.mxu0 0
    %101 = vmatprep.subr.bf16.mxu0 0
    %102 = vmatpush1.bf16.msra.mxu0 0
    %103 = vmatprep.subr.bf16.mxu0 0
    %104 = vmatpush1.bf16.msra.mxu0 0
    %105 = vmatprep.subr.bf16.mxu0 0
    %106 = vmatpush1.bf16.msra.mxu0 0
    %107 = vmatprep.subr.bf16.mxu0 0
    %108 = vmatpush1.bf16.msra.mxu0 0
    %109 = vmatprep.mubr.bf16.mxu0 0
    %110 = vmatmul.mubr.bf16.gmra.mrb[0].mxu0 %v71
    %v111 = vpop.f32.mrb[0].mxu0
    %v112 = vadd.f32 %v56, %v111
    %v113 = vpop.f32.mrb[0].mxu0
    %v114 = vpop.f32.mrb[0].mxu0
    %v115 = vpop.f32.mrb[0].mxu0
    %116 = vdwg.mxu0
    %v117 = vmax.f32 %v112, 0.0
    %v118 = vpack.c.bf16 %v117, %v117
    %v119 = vld [vmem:[%s3] sm:$0xf]
    %v120 = vld [vmem:[%s3 + $0x4] sm:$0xf]
    %v121 = vld [vmem:[%s3 + $0x8] sm:$0xf]
    %v122 = vld [vmem:[%s3 + $0xc] sm:$0xf]
    %v123 = vld [vmem:[%s4] sm:$0x1]
    %v125 = vlaneseq
    %v126 = vshrl.u32 %v125, 7
    %v127 = vsub.s32 0, %v126
    %v128 = vrot.slane %v123, %v127
    %v134 = vunpack.c.l.b16 %v119
    %v135 = vunpack.c.l.b16 %v120
    %v136 = vunpack.c.l.b16 %v121
    %v137 = vunpack.c.l.b16 %v122
    %v138 = vpack.c.b16 %v135, %v134
    %v139 = vpack.c.b16 %v137, %v136
    %vm142 = vcmask 261120
    %v144 = vsel %vm142, %v118, 0
    %146 = vmatprep.subr.bf16.mxu0 0
    %147 = vmatpush1.bf16.msra.mxu0 %v138
    %148 = vmatprep.subr.bf16.mxu0 0
    %149 = vmatpush1.bf16.msra.mxu0 %v139
    %150 = vmatprep.subr.bf16.mxu0 0
    %151 = vmatpush1.bf16.msra.mxu0 0
    %152 = vmatprep.subr.bf16.mxu0 0
    %153 = vmatpush1.bf16.msra.mxu0 0
    %154 = vmatprep.subr.bf16.mxu0 0
    %155 = vmatpush1.bf16.msra.mxu0 0
    %156 = vmatprep.subr.bf16.mxu0 0
    %157 = vmatpush1.bf16.msra.mxu0 0
    %158 = vmatprep.subr.bf16.mxu0 0
    %159 = vmatpush1.bf16.msra.mxu0 0
    %160 = vmatprep.subr.bf16.mxu0 0
    %161 = vmatpush1.bf16.msra.mxu0 0
    %162 = vmatprep.subr.bf16.mxu0 0
    %163 = vmatpush1.bf16.msra.mxu0 0
    %164 = vmatprep.subr.bf16.mxu0 0
    %165 = vmatpush1.bf16.msra.mxu0 0
    %166 = vmatprep.subr.bf16.mxu0 0
    %167 = vmatpush1.bf16.msra.mxu0 0
    %168 = vmatprep.subr.bf16.mxu0 0
    %169 = vmatpush1.bf16.msra.mxu0 0
    %170 = vmatprep.subr.bf16.mxu0 0
    %171 = vmatpush1.bf16.msra.mxu0 0
    %172 = vmatprep.subr.bf16.mxu0 0
    %173 = vmatpush1.bf16.msra.mxu0 0
    %174 = vmatprep.subr.bf16.mxu0 0
    %175 = vmatpush1.bf16.msra.mxu0 0
    %176 = vmatprep.subr.bf16.mxu0 0
    %177 = vmatpush1.bf16.msra.mxu0 0
    %178 = vmatprep.mubr.bf16.mxu0 0
    %179 = vmatmul.mubr.bf16.gmra.mrb[0].mxu0 %v144
    %v180 = vpop.f32.mrb[0].mxu0
    %v181 = vadd.f32 %v128, %v180
    %v182 = vpop.f32.mrb[0].mxu0
    %v183 = vpop.f32.mrb[0].mxu0
    %v184 = vpop.f32.mrb[0].mxu0
    %185 = vdwg.mxu0
    %v186 = vmax.f32 %v181, 0.0
    %v187 = vpack.c.bf16 %v186, %v186
    %v188 = vld [vmem:[%s5] sm:$0xf]
    %v189 = vld [vmem:[%s5 + $0x4] sm:$0xf]
    %v190 = vld [vmem:[%s5 + $0x8] sm:$0xf]
    %v191 = vld [vmem:[%s5 + $0xc] sm:$0xf]
    %v192 = vld [vmem:[%s5 + $0x10] sm:$0xf]
    %v193 = vld [vmem:[%s5 + $0x14] sm:$0xf]
    %v194 = vld [vmem:[%s5 + $0x18] sm:$0xf]
    %v195 = vld [vmem:[%s5 + $0x1c] sm:$0xf]
    %v196 = vld [vmem:[%s6] sm:$0x1]
    %v198 = vlaneseq
    %v199 = vshrl.u32 %v198, 7
    %v200 = vsub.s32 0, %v199
    %v201 = vrot.slane %v196, %v200
    %v211 = vunpack.c.l.b16 %v188
    %v212 = vunpack.c.l.b16 %v189
    %v213 = vunpack.c.l.b16 %v190
    %v214 = vunpack.c.l.b16 %v191
    %v215 = vunpack.c.l.b16 %v192
    %v216 = vunpack.c.l.b16 %v193
    %v217 = vunpack.c.l.b16 %v194
    %v218 = vunpack.c.l.b16 %v195
    %v219 = vpack.c.b16 %v212, %v211
    %v220 = vpack.c.b16 %v214, %v213
    %v221 = vpack.c.b16 %v216, %v215
    %v222 = vpack.c.b16 %v218, %v217
    %vm227 = vcmask 523264
    %v229 = vsel %vm227, %v187, 0
    %231 = vmatprep.subr.bf16.mxu0 0
    %232 = vmatpush1.bf16.msra.mxu0 %v219
    %233 = vmatprep.subr.bf16.mxu0 0
    %234 = vmatpush1.bf16.msra.mxu0 %v220
    %235 = vmatprep.subr.bf16.mxu0 0
    %236 = vmatpush1.bf16.msra.mxu0 %v221
    %237 = vmatprep.subr.bf16.mxu0 0
    %238 = vmatpush1.bf16.msra.mxu0 %v222
    %239 = vmatprep.subr.bf16.mxu0 0
    %240 = vmatpush1.bf16.msra.mxu0 0
    %241 = vmatprep.subr.bf16.mxu0 0
    %242 = vmatpush1.bf16.msra.mxu0 0
    %243 = vmatprep.subr.bf16.mxu0 0
    %244 = vmatpush1.bf16.msra.mxu0 0
    %245 = vmatprep.subr.bf16.mxu0 0
    %246 = vmatpush1.bf16.msra.mxu0 0
    %247 = vmatprep.subr.bf16.mxu0 0
    %248 = vmatpush1.bf16.msra.mxu0 0
    %249 = vmatprep.subr.bf16.mxu0 0
    %250 = vmatpush1.bf16.msra.mxu0 0
    %251 = vmatprep.subr.bf16.mxu0 0
    %252 = vmatpush1.bf16.msra.mxu0 0
    %253 = vmatprep.subr.bf16.mxu0 0
    %254 = vmatpush1.bf16.msra.mxu0 0
    %255 = vmatprep.subr.bf16.mxu0 0
    %256 = vmatpush1.bf16.msra.mxu0 0
    %257 = vmatprep.subr.bf16.mxu0 0
    %258 = vmatpush1.bf16.msra.mxu0 0
    %259 = vmatprep.subr.bf16.mxu0 0
    %260 = vmatpush1.bf16.msra.mxu0 0
    %261 = vmatprep.subr.bf16.mxu0 0
    %262 = vmatpush1.bf16.msra.mxu0 0
    %263 = vmatprep.mubr.bf16.mxu0 0
    %264 = vmatmul.mubr.bf16.gmra.mrb[0].mxu0 %v229
    %v265 = vpop.f32.mrb[0].mxu0
    %v266 = vadd.f32 %v201, %v265
    %v267 = vpop.f32.mrb[0].mxu0
    %v268 = vpop.f32.mrb[0].mxu0
    %v269 = vpop.f32.mrb[0].mxu0
    %270 = vdwg.mxu0
    %v271 = vmax.f32 %v266, 0.0
    %v272 = vpack.c.bf16 %v271, %v271
    %v273 = vld [vmem:[%s7] sm:$0xf]
    %v274 = vld [vmem:[%s7 + $0x4] sm:$0xf]
    %v275 = vld [vmem:[%s7 + $0x8] sm:$0xf]
    %v276 = vld [vmem:[%s7 + $0xc] sm:$0xf]
    %v277 = vld [vmem:[%s8] sm:$0x1]
    %v279 = vlaneseq
    %v280 = vshrl.u32 %v279, 7
    %v281 = vsub.s32 0, %v280
    %v282 = vrot.slane %v277, %v281
    %v288 = vunpack.c.l.b16 %v273
    %v289 = vunpack.c.l.b16 %v274
    %v290 = vunpack.c.l.b16 %v275
    %v291 = vunpack.c.l.b16 %v276
    %v292 = vpack.c.b16 %v289, %v288
    %v293 = vpack.c.b16 %v291, %v290
    %v297 = vsel %vm142, %v272, 0
    %299 = vmatprep.subr.bf16.mxu0 0
    %300 = vmatpush1.bf16.msra.mxu0 %v292
    %301 = vmatprep.subr.bf16.mxu0 0
    %302 = vmatpush1.bf16.msra.mxu0 %v293
    %303 = vmatprep.subr.bf16.mxu0 0
    %304 = vmatpush1.bf16.msra.mxu0 0
    %305 = vmatprep.subr.bf16.mxu0 0
    %306 = vmatpush1.bf16.msra.mxu0 0
    %307 = vmatprep.subr.bf16.mxu0 0
    %308 = vmatpush1.bf16.msra.mxu0 0
    %309 = vmatprep.subr.bf16.mxu0 0
    %310 = vmatpush1.bf16.msra.mxu0 0
    %311 = vmatprep.subr.bf16.mxu0 0
    %312 = vmatpush1.bf16.msra.mxu0 0
    %313 = vmatprep.subr.bf16.mxu0 0
    %314 = vmatpush1.bf16.msra.mxu0 0
    %315 = vmatprep.subr.bf16.mxu0 0
    %316 = vmatpush1.bf16.msra.mxu0 0
    %317 = vmatprep.subr.bf16.mxu0 0
    %318 = vmatpush1.bf16.msra.mxu0 0
    %319 = vmatprep.subr.bf16.mxu0 0
    %320 = vmatpush1.bf16.msra.mxu0 0
    %321 = vmatprep.subr.bf16.mxu0 0
    %322 = vmatpush1.bf16.msra.mxu0 0
    %323 = vmatprep.subr.bf16.mxu0 0
    %324 = vmatpush1.bf16.msra.mxu0 0
    %325 = vmatprep.subr.bf16.mxu0 0
    %326 = vmatpush1.bf16.msra.mxu0 0
    %327 = vmatprep.subr.bf16.mxu0 0
    %328 = vmatpush1.bf16.msra.mxu0 0
    %329 = vmatprep.subr.bf16.mxu0 0
    %330 = vmatpush1.bf16.msra.mxu0 0
    %331 = vmatprep.mubr.bf16.mxu0 0
    %332 = vmatmul.mubr.bf16.gmra.mrb[0].mxu0 %v297
    %v333 = vpop.f32.mrb[0].mxu0
    %v334 = vadd.f32 %v282, %v333
    %v335 = vpop.f32.mrb[0].mxu0
    %v336 = vpop.f32.mrb[0].mxu0
    %v337 = vpop.f32.mrb[0].mxu0
    %338 = vdwg.mxu0
    %339 = vst [vmem:[#allocation5] sm:$0xff] %v334
    // Predicated region
    $region42: #{tpu_custom_call.1} parent=1 // pred_check
      _
    $region43: #{tpu_custom_call.1} parent=1 // pred_check_branch
      %341 = sbr.rel (0) target = $region45
    $region44: #{tpu_custom_call.1} parent=1 // pred_region
      %s343 = ssub.s32 128, 128
      %344 = vsyncadd [#allocation4], %s343
      %s346 = sshll.u32 [#allocation5], 4
      %s347 = int_to_ptr.vmem [resolvable:$true] %s346
      %349 = dma.vmem_to_hbm [thread:$0]  %s347, 128, %s9, [#allocation4]
    $region45: #{tpu_custom_call.1} parent=1 // pred_fallthru
      _
    // Predicated region
    $region46: #{tpu_custom_call.1} parent=1 // pred_check
      _
    $region47: #{tpu_custom_call.1} parent=1 // pred_check_branch
      %351 = sbr.rel (0) target = $region49
    $region48: #{tpu_custom_call.1} parent=1 // pred_region
      %352 = dma.done [#allocation4], 128
    $region49: #{tpu_custom_call.1} parent=1 // pred_fallthru
      _
    %353 = vsyncpa [#allocation3], 1
    %354 = vsyncpa [#allocation4], 1

</llo_original>
